<compile_context>
chip_gen: v7x
topology: tpu7x:2x2x1
jax: 0.10.0
libtpu: 0.0.40
codegen_flags: <defaults>
</compile_context>

<pallas_src>
import math

import jax
import jax.numpy as jnp
from jax.experimental import pallas as pl
from jax.experimental.pallas import tpu as pltpu

_TWO_PI = 2.0 * math.pi

# Rows (sublanes) per grid step.  >=512-row tiles reach ~85% of HBM roofline;
# each grid step costs ~0.35us fixed overhead.  At TR=1024 the double-buffered
# working set is ~7 MiB (7 f32 planes of (TR, 128) x 2 buffers).
_ROW_TILE_CAP = 1024


def _round_up(x: int, m: int) -> int:
    return ((x + m - 1) // m) * m


def _row_layout(batch: int, n_osc: int):
    """Flatten (B, n) into one lane-dense axis: (rows, 128) f32 per component."""
    bn = batch * n_osc
    rows_min = _round_up(pl.cdiv(bn, 128), 8)   # whole (8, 128) vregs
    tr = min(rows_min, _ROW_TILE_CAP)           # rows per grid step (mult. of 8)
    rows = _round_up(rows_min, tr)              # total rows (multiple of tr)
    return tr, rows


def prepare_vbc(vbc, n_oscillators):
    """One-time setup: (B, T, 3N) -> component-major lane-dense (3, T, rows, 128).

    Call ONCE per trajectory, not per forward() step: re-laying out all T
    timesteps every step would move T x more HBM bytes than the kernel itself.
    """
    B, T, three_n = vbc.shape
    n = n_oscillators
    assert three_n == 3 * n
    _, rows = _row_layout(B, n)
    vbc_cm = jnp.transpose(vbc.reshape(B, T, 3, n), (2, 1, 0, 3))
    vbc_cm = vbc_cm.reshape(3, T, B * n).astype(jnp.float32)
    vbc_cm = jnp.pad(vbc_cm, ((0, 0), (0, 0), (0, rows * 128 - B * n)))
    return vbc_cm.reshape(3, T, rows, 128)


def _hopf_kernel(ind_ref, rrd_ref, vbc_ref, out_ref):
    """One row tile of the Hopf-oscillator derivative (pure VPU, f32).

    ind_ref : (1,) int32 SMEM  -- scalar-prefetch timestep (used by index_maps)
    rrd_ref : (2, TR, 128)     -- [r | r_d]   (psi is never read -> not DMA'd)
    vbc_ref : (3, TR, 128)     -- vbc[:, ind] gathered by BlockSpec, [v | b | c]
    out_ref : (2, TR, 128) f32 -- [psi_dot | r_d_dot] (r_d passthrough skipped)
    """
    del ind_ref  # consumed only by the vbc index_map (scalar prefetch)

    r = rrd_ref[0]
    r_d = rrd_ref[1]
    v = vbc_ref[0]
    b = vbc_ref[1]
    c = vbc_ref[2]

    # Two direct, dense, unmasked whole-vreg stores (no jnp.stack intermediate).
    out_ref[0] = _TWO_PI * v
    out_ref[1] = c * (c * 0.25 * (b - r) - r_d)


def hopf_oscillator_forward(t, cpg_states, vbc_prepared, dt, n_oscillators):
    """Pallas equivalent of HopfOscillatorModuleEvnState.forward.

    cpg_states   : (B, 3*N)           [psi | r | r_d]
    vbc_prepared : (3, T, rows, 128)  output of prepare_vbc()
    returns      : (B, 3*N) f32       [psi_dot | r_d | r_d_dot]
    """
    B, three_n = cpg_states.shape
    n = n_oscillators
    assert three_n == 3 * n
    _, T, rows_v, _ = vbc_prepared.shape
    tr, rows = _row_layout(B, n)
    assert rows_v == rows

    # ind = (t * (1/dt)).int() -- truncation toward zero, mirroring torch .int().
    # NOTE: f32 rounding can land just below an integer (latent off-by-one in
    # the original module as well).  Clamped so the data-dependent index_map
    # can never read out of range (torch would raise an IndexError instead).
    ind = jnp.asarray(t * (1.0 / dt), dtype=jnp.float32).astype(jnp.int32)
    ind = jnp.clip(ind, 0, T - 1).reshape((1,))

    # Per-call cpg re-layout touches only B*2N elements (psi never read).
    rrd = cpg_states[:, n:].reshape(B, 2, n).astype(jnp.float32)
    rrd_cm = jnp.transpose(rrd, (1, 0, 2)).reshape(2, B * n)
    rrd_cm = jnp.pad(rrd_cm, ((0, 0), (0, rows * 128 - B * n)))
    rrd_cm = rrd_cm.reshape(2, rows, 128)

    grid = (rows // tr,)

    grid_spec = pltpu.PrefetchScalarGridSpec(
        num_scalar_prefetch=1,
        grid=grid,
        in_specs=[
            # [r | r_d]: dense (2, TR, 128) block per row tile.
            pl.BlockSpec((2, tr, 128), lambda i, ind_ref: (0, i, 0)),
            # vbc: gather the single timestep `ind` via scalar prefetch; the
            # time dim is squeezed so the kernel sees (3, TR, 128).  Only one
            # timestep is ever DMA'd from HBM.
            pl.BlockSpec((3, pl.Squeezed(), tr, 128),
                         lambda i, ind_ref: (0, ind_ref[0], i, 0)),
        ],
        out_specs=pl.BlockSpec((2, tr, 128), lambda i, ind_ref: (0, i, 0)),
    )

    elems = rows * 128
    out_p = pl.pallas_call(
        _hopf_kernel,
        out_shape=jax.ShapeDtypeStruct((2, rows, 128), jnp.float32),
        grid_spec=grid_spec,
        compiler_params=pltpu.CompilerParams(
            dimension_semantics=("parallel",),
        ),
        cost_estimate=pl.CostEstimate(
            flops=6 * elems, transcendentals=0,
            bytes_accessed=4 * 7 * elems),
    )(ind, rrd_cm, vbc_prepared)

    # Assemble (B, 3N) = [psi_dot | r_d | r_d_dot].  out[1] of the original
    # module (r_d) is a verbatim copy of the input state, so it is taken from
    # cpg_states rather than stored by the kernel.
    flat = out_p.reshape(2, rows * 128)[:, :B * n].reshape(2, B, n)
    psi_dot = flat[0]
    r_d_dot = flat[1]
    r_d = cpg_states[:, 2 * n:3 * n].astype(jnp.float32)
    return jnp.concatenate([psi_dot, r_d, r_d_dot], axis=1)


def _reference_forward(t, cpg_states, vbc, dt, n):
    T = vbc.shape[1]
    ind = jnp.asarray(t * (1.0 / dt), dtype=jnp.float32).astype(jnp.int32)
    ind = jnp.clip(ind, 0, T - 1)
    cur = vbc[:, ind, :]
    r = cpg_states[:, n:2 * n]
    r_d = cpg_states[:, 2 * n:3 * n]
    v = cur[:, 0:n]
    b = cur[:, n:2 * n]
    c = cur[:, 2 * n:3 * n]
    r_d_dot = c * (c * 0.25 * (b - r) - r_d)
    psi_dot = 2 * math.pi * v
    return jnp.concatenate([psi_dot, r_d, r_d_dot], axis=1).astype(jnp.float32)


def _run_case(key, B, n_osc, T, dt, t):
    k1, k2 = jax.random.split(key)
    cpg_states = jax.random.normal(k1, (B, 3 * n_osc), dtype=jnp.float32)
    vbc = jax.random.normal(k2, (B, T, 3 * n_osc), dtype=jnp.float32)

    vbc_prep = prepare_vbc(vbc, n_osc)          # one-time setup
    out = hopf_oscillator_forward(jnp.float32(t), cpg_states, vbc_prep, dt, n_osc)
    out = jax.block_until_ready(out)

    ref = _reference_forward(jnp.float32(t), cpg_states, vbc, dt, n_osc)
    assert out.shape == (B, 3 * n_osc) and out.dtype == jnp.float32
    assert jnp.allclose(out, ref, atol=1e-5, rtol=1e-5), float(
        jnp.max(jnp.abs(out - ref)))


if __name__ == "__main__":
    key = jax.random.PRNGKey(0)
    k_a, k_b = jax.random.split(key)

    # Small deterministic example: batch=4, n_oscillators=8, seq=8.
    _run_case(k_a, B=4, n_osc=8, T=8, dt=0.01, t=0.03)
    # Non-power-of-two shapes to exercise the lane-dense flatten + padding.
    _run_case(k_b, B=7, n_osc=5, T=12, dt=0.02, t=0.07)

    print("KERNEL_OK")
</pallas_src>

<mosaic_0001>
module attributes {stable_mosaic.version = 11 : i64} {
  func.func @_hopf_kernel(%arg0: i32, %arg1: memref<1xi32, #tpu.memory_space<smem>>, %arg2: memref<2x8x128xf32, #tpu.memory_space<vmem>>, %arg3: memref<3x1x8x128xf32, #tpu.memory_space<vmem>>, %arg4: memref<2x8x128xf32, #tpu.memory_space<vmem>>) attributes {dimension_semantics = [#tpu.dimension_semantics<parallel>], iteration_bounds = array<i64: 1>, scalar_prefetch = 1 : i64, scratch_operands = 0 : i64, tpu.core_type = #tpu.core_type<tc>, window_params = [{transform_indices = @transform_0, window_bounds = array<i64: 2, 8, 128>}, {transform_indices = @transform_1, window_bounds = array<i64: 3, 1, 8, 128>}, {transform_indices = @transform_2, window_bounds = array<i64: 2, 8, 128>}]} {
    %c0 = arith.constant 0 : index
    %c0_0 = arith.constant 0 : index
    %c0_1 = arith.constant 0 : index
    %0 = vector.load %arg2[%c0, %c0_0, %c0_1] : memref<2x8x128xf32, #tpu.memory_space<vmem>>, vector<1x8x128xf32>
    %1 = vector.shape_cast %0 : vector<1x8x128xf32> to vector<8x128xf32>
    %c1 = arith.constant 1 : index
    %c0_2 = arith.constant 0 : index
    %c0_3 = arith.constant 0 : index
    %2 = vector.load %arg2[%c1, %c0_2, %c0_3] : memref<2x8x128xf32, #tpu.memory_space<vmem>>, vector<1x8x128xf32>
    %3 = vector.shape_cast %2 : vector<1x8x128xf32> to vector<8x128xf32>
    %c0_4 = arith.constant 0 : index
    %c0_5 = arith.constant 0 : index
    %c0_6 = arith.constant 0 : index
    %c0_7 = arith.constant 0 : index
    %4 = vector.load %arg3[%c0_4, %c0_5, %c0_6, %c0_7] : memref<3x1x8x128xf32, #tpu.memory_space<vmem>>, vector<1x1x8x128xf32>
    %5 = vector.shape_cast %4 : vector<1x1x8x128xf32> to vector<8x128xf32>
    %c1_8 = arith.constant 1 : index
    %c0_9 = arith.constant 0 : index
    %c0_10 = arith.constant 0 : index
    %c0_11 = arith.constant 0 : index
    %6 = vector.load %arg3[%c1_8, %c0_9, %c0_10, %c0_11] : memref<3x1x8x128xf32, #tpu.memory_space<vmem>>, vector<1x1x8x128xf32>
    %7 = vector.shape_cast %6 : vector<1x1x8x128xf32> to vector<8x128xf32>
    %c2 = arith.constant 2 : index
    %c0_12 = arith.constant 0 : index
    %c0_13 = arith.constant 0 : index
    %c0_14 = arith.constant 0 : index
    %8 = vector.load %arg3[%c2, %c0_12, %c0_13, %c0_14] : memref<3x1x8x128xf32, #tpu.memory_space<vmem>>, vector<1x1x8x128xf32>
    %9 = vector.shape_cast %8 : vector<1x1x8x128xf32> to vector<8x128xf32>
    %cst = arith.constant 6.28318548 : f32
    %10 = vector.broadcast %cst : f32 to vector<8x128xf32>
    %11 = arith.mulf %10, %5 : vector<8x128xf32>
    %c0_15 = arith.constant 0 : index
    %c0_16 = arith.constant 0 : index
    %c0_17 = arith.constant 0 : index
    %12 = vector.load %arg4[%c0_15, %c0_16, %c0_17] : memref<2x8x128xf32, #tpu.memory_space<vmem>>, vector<1x8x128xf32>
    %13 = vector.shape_cast %12 : vector<1x8x128xf32> to vector<8x128xf32>
    %14 = vector.shape_cast %11 : vector<8x128xf32> to vector<1x8x128xf32>
    tpu.vector_store %arg4[%c0_15, %c0_16, %c0_17], %14 {strides = array<i32>} : memref<2x8x128xf32, #tpu.memory_space<vmem>>, vector<1x8x128xf32>,
    %cst_18 = arith.constant 2.500000e-01 : f32
    %15 = vector.broadcast %cst_18 : f32 to vector<8x128xf32>
    %16 = arith.mulf %9, %15 : vector<8x128xf32>
    %17 = arith.subf %7, %1 : vector<8x128xf32>
    %18 = arith.mulf %16, %17 : vector<8x128xf32>
    %19 = arith.subf %18, %3 : vector<8x128xf32>
    %20 = arith.mulf %9, %19 : vector<8x128xf32>
    %c1_19 = arith.constant 1 : index
    %c0_20 = arith.constant 0 : index
    %c0_21 = arith.constant 0 : index
    %21 = vector.load %arg4[%c1_19, %c0_20, %c0_21] : memref<2x8x128xf32, #tpu.memory_space<vmem>>, vector<1x8x128xf32>
    %22 = vector.shape_cast %21 : vector<1x8x128xf32> to vector<8x128xf32>
    %23 = vector.shape_cast %20 : vector<8x128xf32> to vector<1x8x128xf32>
    tpu.vector_store %arg4[%c1_19, %c0_20, %c0_21], %23 {strides = array<i32>} : memref<2x8x128xf32, #tpu.memory_space<vmem>>, vector<1x8x128xf32>,
    return
  }
  func.func @transform_0(%arg0: i32, %arg1: memref<1xi32, #tpu.memory_space<smem>>) -> (i32, i32, i32) {
    %c0_i32 = arith.constant 0 : i32
    %c0_i32_0 = arith.constant 0 : i32
    %c0_i32_1 = arith.constant 0 : i32
    return %c0_i32, %arg0, %c0_i32_0 : i32, i32, i32
  }
  func.func @transform_1(%arg0: i32, %arg1: memref<1xi32, #tpu.memory_space<smem>>) -> (i32, i32, i32, i32) {
    %c0 = arith.constant 0 : index
    %0 = memref.load %arg1[%c0] : memref<1xi32, #tpu.memory_space<smem>>
    %c0_i32 = arith.constant 0 : i32
    %c0_i32_0 = arith.constant 0 : i32
    %c0_i32_1 = arith.constant 0 : i32
    return %c0_i32, %0, %arg0, %c0_i32_0 : i32, i32, i32, i32
  }
  func.func @transform_2(%arg0: i32, %arg1: memref<1xi32, #tpu.memory_space<smem>>) -> (i32, i32, i32) {
    %c0_i32 = arith.constant 0 : i32
    %c0_i32_0 = arith.constant 0 : i32
    %c0_i32_1 = arith.constant 0 : i32
    return %c0_i32, %arg0, %c0_i32_0 : i32, i32, i32
  }
}

</mosaic_0001>

<llo_original>
// kernel: tpu_custom_call.1
$region0: #{tpu_custom_call.1}
  #allocation0 [shape = 'u32[]', space=smem, size = 0x4, offset = 0x4, fixed_abs, tag = 'smem constant byte address 0x4 - core index']
  #allocation1 [shape = 'u32[144,128]{1,0:T(1,128)}', space=vmem, size = 0x12000, scoped, tag = 'internal scratch']
  #allocation2 [shape = 's32[1]{0}', space=sflag, size = 0x4, scoped, tag = 'scoped memory for tpu_custom_call.1']
  #allocation3 [shape = 's32[1]{0:T(128)S(6)}', space=smem, size = 0x200, scoped, tag = 'prefetched SMEM operand 0']
  %s0 = inlined_call_operand.<no memory space> [shape: s32[1], index: 0, kind: input, shape index: {}]
  %s1 = inlined_call_operand.hbm [shape: f32[2,8,128], index: 1, kind: input, shape index: {}]
  %s2 = inlined_call_operand.hbm [shape: f32[3,8,8,128], index: 2, kind: input, shape index: {}]
  %s3 = inlined_call_operand.hbm [shape: f32[2,8,128], index: 3, kind: output, shape index: {}]
  %s4 = sld [smem:[#allocation0]]
  $region26: #{tpu_custom_call.1} parent=0
    _
  %s6 = ssub.s32 1, %s4
  %s7 = scalar_select 0, %s6, %s4
  %8 = sst [smem:[#allocation3]] %s0
  $region1: #{tpu_custom_call.1} parent=0
    #allocation4 [shape = 'u8[8192]{0}', space=vmem, size = 0x2000, scoped, tag = 'input window, operand 1, single buffered']
    #allocation5 [shape = 's32[1]{0}', space=sflag, size = 0x4, scoped, tag = 'scoped memory for tpu_custom_call.1']
    #allocation6 [shape = 's32[1]{0}', space=sflag, size = 0x4, scoped, tag = 'scoped memory for tpu_custom_call.1']
    #allocation7 [shape = 'u8[12288]{0}', space=vmem, size = 0x3000, scoped, tag = 'input window, operand 2, single buffered']
    #allocation8 [shape = 's32[1]{0}', space=sflag, size = 0x4, scoped, tag = 'scoped memory for tpu_custom_call.1']
    #allocation9 [shape = 'u8[8192]{0}', space=vmem, size = 0x2000, scoped, tag = 'output window, operand 0, single buffered']
    %9 = vsyncpa [#allocation5], 0
    %10 = vsyncpa [#allocation8], 0
    %11 = vsyncpa [#allocation6], 0
    // Predicated region
    $region2: #{tpu_custom_call.1} parent=1 // pred_check
      _
    $region3: #{tpu_custom_call.1} parent=1 // pred_check_branch
      %13 = sbr.rel (0) target = $region5
    $region4: #{tpu_custom_call.1} parent=1 // pred_region
      %s15 = ssub.s32 256, 256
      %16 = vsyncadd [#allocation5], %s15
      %s17 = sshll.u32 [#allocation4], 4
      %s18 = int_to_ptr.vmem [resolvable:$true] %s17
      %23 = dma.hbm_to_vmem [thread:$0]  %s1, 256, %s18, [#allocation5], 128, 128, 8
    $region5: #{tpu_custom_call.1} parent=1 // pred_fallthru
      _
    // Predicated region
    $region6: #{tpu_custom_call.1} parent=1 // pred_check
      _
    $region7: #{tpu_custom_call.1} parent=1 // pred_check_branch
      %25 = sbr.rel (0) target = $region9
    $region8: #{tpu_custom_call.1} parent=1 // pred_region
      %s26 = sld [smem:[#allocation3]]
      %s28 = ssub.s32 384, 384
      %29 = vsyncadd [#allocation8], %s28
      %s30 = smul.addr %s26, 128
      %s31 = scalar_lea.hbm %s2, %s30
      %s32 = sshll.u32 [#allocation7], 4
      %s33 = int_to_ptr.vmem [resolvable:$true] %s32
      %38 = dma.hbm_to_vmem [thread:$0]  %s31, 384, %s33, [#allocation8], 1024, 128, 8
    $region9: #{tpu_custom_call.1} parent=1 // pred_fallthru
      _
    // Predicated region
    $region10: #{tpu_custom_call.1} parent=1 // pred_check
      _
    $region11: #{tpu_custom_call.1} parent=1 // pred_check_branch
      %40 = sbr.rel (0) target = $region13
    $region12: #{tpu_custom_call.1} parent=1 // pred_region
      %41 = dma.done [#allocation5], 256
    $region13: #{tpu_custom_call.1} parent=1 // pred_fallthru
      _
    // Predicated region
    $region14: #{tpu_custom_call.1} parent=1 // pred_check
      _
    $region15: #{tpu_custom_call.1} parent=1 // pred_check_branch
      %43 = sbr.rel (0) target = $region17
    $region16: #{tpu_custom_call.1} parent=1 // pred_region
      %44 = dma.done [#allocation8], 384
    $region17: #{tpu_custom_call.1} parent=1 // pred_fallthru
      _
    %s45 = sld [smem:[#allocation3]]
    %v46 = vld [vmem:[#allocation4] sm:$0xff]
    %s47 = scalar_lea.vmem [#allocation4], 8
    %v48 = vld [vmem:[%s47] sm:$0xff]
    %v49 = vld [vmem:[#allocation7] sm:$0xff]
    %s50 = scalar_lea.vmem [#allocation7], 8
    %v51 = vld [vmem:[%s50] sm:$0xff]
    %s52 = scalar_lea.vmem [#allocation7], 16
    %v53 = vld [vmem:[%s52] sm:$0xff]
    %v54 = vmul.f32 %v49, 6.2831855
    %55 = vst [vmem:[#allocation9] sm:$0xff] %v54
    %v56 = vmul.f32 %v53, 0.25
    %v57 = vsub.f32 %v51, %v46
    %v58 = vmul.f32 %v56, %v57
    %v59 = vsub.f32 %v58, %v48
    %v60 = vmul.f32 %v53, %v59
    %s61 = scalar_lea.vmem [#allocation9], 8
    %62 = vst [vmem:[%s61] sm:$0xff] %v60
    // Predicated region
    $region18: #{tpu_custom_call.1} parent=1 // pred_check
      _
    $region19: #{tpu_custom_call.1} parent=1 // pred_check_branch
      %64 = sbr.rel (0) target = $region21
    $region20: #{tpu_custom_call.1} parent=1 // pred_region
      %s66 = ssub.s32 256, 256
      %67 = vsyncadd [#allocation6], %s66
      %s68 = sshll.u32 [#allocation9], 4
      %s69 = int_to_ptr.vmem [resolvable:$true] %s68
      %74 = dma.vmem_to_hbm [thread:$0]  %s69, 256, %s3, [#allocation6], 128, 128, 8
    $region21: #{tpu_custom_call.1} parent=1 // pred_fallthru
      _
    // Predicated region
    $region22: #{tpu_custom_call.1} parent=1 // pred_check
      _
    $region23: #{tpu_custom_call.1} parent=1 // pred_check_branch
      %76 = sbr.rel (0) target = $region25
    $region24: #{tpu_custom_call.1} parent=1 // pred_region
      %77 = dma.done [#allocation6], 256
    $region25: #{tpu_custom_call.1} parent=1 // pred_fallthru
      _
    %78 = vsyncpa [#allocation5], 1
    %79 = vsyncpa [#allocation8], 1
    %80 = vsyncpa [#allocation6], 1

</llo_original>
